<compile_context>
chip_gen: v6e
topology: v6e:2x2x1
jax: 0.10.0
libtpu: 0.0.40
codegen_flags: <defaults>
</compile_context>

<pallas_src>
import jax
import jax.lax as lax
import jax.numpy as jnp
from jax.experimental import pallas as pl
from jax.experimental.pallas import tpu as pltpu

DROPOUT_PROB = 0.3
BN_EPS = 1e-5
LANE = 128


def residual_block_kernel(x_ref, wcat_ref, g1_ref, be1_ref, m1_ref,
                          w2_ref, g2_ref, be2_ref, m2_ref, br_ref, o_ref):
    fp = o_ref.shape[-1]                      # padded out_features (multiple of 128)
    x = x_ref[...]

    # Fused first-layer + residual matmul: single MXU push over a lane-dense (in, 2*Fp) RHS.
    y = jnp.dot(x.astype(jnp.bfloat16), wcat_ref[...],
                preferred_element_type=jnp.float32)
    h = y[:, :fp]                             # main branch (pre-BN bias omitted: BN cancels it)
    res = y[:, fp:] + br_ref[...]             # residual Linear keeps its bias

    def bn_relu_drop(h, gamma, beta, mask):
        # BatchNorm1d (training): per-feature batch mean, biased variance, folded into
        # one scale/shift so the per-element cost is mul + add.
        mu = jnp.mean(h, axis=0, keepdims=True)
        var = jnp.maximum(jnp.mean(h * h, axis=0, keepdims=True) - mu * mu, 0.0)
        s = gamma * lax.rsqrt(var + BN_EPS)
        t = beta - mu * s
        h = jnp.maximum(h * s + t, 0.0)       # BN + ReLU
        return h * mask                       # dropout: mask pre-scaled to {0, 1/(1-p)}

    h = bn_relu_drop(h, g1_ref[...], be1_ref[...], m1_ref[...])
    h = jnp.dot(h.astype(jnp.bfloat16), w2_ref[...],
                preferred_element_type=jnp.float32)
    h = bn_relu_drop(h, g2_ref[...], be2_ref[...], m2_ref[...])

    o_ref[...] = (h + res).astype(o_ref.dtype)


def _pad_last(a, multiple):
    pad = -a.shape[-1] % multiple
    if pad == 0:
        return a
    widths = [(0, 0)] * (a.ndim - 1) + [(0, pad)]
    return jnp.pad(a, widths)


def init_params(key, in_features, out_features):
    """PyTorch-default init: Linear ~ U(-1/sqrt(fan_in), 1/sqrt(fan_in)); BN gamma=1, beta=0."""
    def linear_init(k, fan_in, fan_out):
        kw, kb = jax.random.split(k)
        bound = 1.0 / (fan_in ** 0.5)
        w = jax.random.uniform(kw, (fan_out, fan_in), jnp.float32, -bound, bound)
        b = jax.random.uniform(kb, (fan_out,), jnp.float32, -bound, bound)
        return w, b

    k1, k2, k3 = jax.random.split(key, 3)
    w1, b1 = linear_init(k1, in_features, out_features)
    w2, b2 = linear_init(k2, out_features, out_features)
    wr, br = linear_init(k3, in_features, out_features)
    return dict(
        w1=w1, b1=b1, g1=jnp.ones((out_features,)), be1=jnp.zeros((out_features,)),
        w2=w2, b2=b2, g2=jnp.ones((out_features,)), be2=jnp.zeros((out_features,)),
        wr=wr, br=br,
    )


def prepare_kernel_params(params):
    """One-time layout prep (call once, reuse across forward calls):
      * transpose Linear weights to (in, out) so the kernel does plain x @ W on the MXU,
      * zero-pad out_features to a multiple of 128 lanes (padded output columns are exactly 0),
      * fuse w1 and wr into one (in, 2*Fp) RHS for a single first-layer matmul,
      * cast matmul weights to bf16; per-feature scale/shift vectors stay f32.
    b1/b2 are intentionally dropped: the following BatchNorm subtracts the batch mean, which
    absorbs any constant bias, so adding them is pure wasted VPU work."""
    out_features = params["w1"].shape[0]
    fp = -(-out_features // LANE) * LANE

    row = lambda v: _pad_last(v.reshape(1, -1).astype(jnp.float32), LANE)      # (1, Fp)

    w1t = _pad_last(params["w1"].T.astype(jnp.float32), LANE)                  # (in, Fp)
    wrt = _pad_last(params["wr"].T.astype(jnp.float32), LANE)                  # (in, Fp)
    wcat = jnp.concatenate([w1t, wrt], axis=1).astype(jnp.bfloat16)            # (in, 2*Fp)

    w2t = _pad_last(params["w2"].T.astype(jnp.float32), LANE)                  # (F, Fp)
    w2t = jnp.pad(w2t, ((0, fp - w2t.shape[0]), (0, 0))).astype(jnp.bfloat16)  # (Fp, Fp)

    return dict(
        wcat=wcat, w2=w2t,
        g1=row(params["g1"]), be1=row(params["be1"]),
        g2=row(params["g2"]), be2=row(params["be2"]),
        br=row(params["br"]),
        out_features=out_features, fp=fp,
    )


def residual_block_forward(x, kparams, dropout_key, dropout_prob=DROPOUT_PROB):
    n, in_features = x.shape
    f, fp = kparams["out_features"], kparams["fp"]
    inv_keep = 1.0 / (1.0 - dropout_prob)

    k1, k2 = jax.random.split(dropout_key)
    # Dropout masks pre-scaled to {0, 1/(1-p)} -> one multiply per element in the kernel.
    m1 = jax.random.bernoulli(k1, 1.0 - dropout_prob, (n, fp)).astype(jnp.float32) * inv_keep
    m2 = jax.random.bernoulli(k2, 1.0 - dropout_prob, (n, fp)).astype(jnp.float32) * inv_keep

    vmem = pl.BlockSpec(memory_space=pltpu.MemorySpace.VMEM)

    flops = 2 * n * in_features * (2 * fp) + 2 * n * fp * fp + 16 * n * fp
    bytes_accessed = (n * in_features * 4 + kparams["wcat"].size * 2 + kparams["w2"].size * 2
                      + 2 * n * fp * 4 + 5 * fp * 4 + n * fp * 4)

    out_padded = pl.pallas_call(
        residual_block_kernel,
        out_shape=jax.ShapeDtypeStruct((n, fp), jnp.float32),
        in_specs=[vmem] * 10,
        out_specs=vmem,
        cost_estimate=pl.CostEstimate(flops=flops, transcendentals=2 * fp,
                                      bytes_accessed=bytes_accessed),
    )(x.astype(jnp.float32), kparams["wcat"],
      kparams["g1"], kparams["be1"], m1,
      kparams["w2"], kparams["g2"], kparams["be2"], m2,
      kparams["br"])

    return out_padded[:, :f]


if __name__ == "__main__":
    key = jax.random.PRNGKey(0)
    k_params, k_x, k_drop = jax.random.split(key, 3)

    batch, in_features, out_features = 8, 16, 32
    params = init_params(k_params, in_features, out_features)
    kparams = prepare_kernel_params(params)
    x = jax.random.normal(k_x, (batch, in_features), dtype=jnp.float32)

    out = residual_block_forward(x, kparams, k_drop)
    out = jax.block_until_ready(out)
    assert out.shape == (batch, out_features)
    assert bool(jnp.all(jnp.isfinite(out)))
    print("KERNEL_OK")
</pallas_src>

<mosaic_0001>
module attributes {stable_mosaic.version = 11 : i64} {
  func.func @residual_block_kernel(%arg0: memref<8x16xf32, #tpu.memory_space<vmem>>, %arg1: memref<16x256xbf16, #tpu.memory_space<vmem>>, %arg2: memref<1x128xf32, #tpu.memory_space<vmem>>, %arg3: memref<1x128xf32, #tpu.memory_space<vmem>>, %arg4: memref<8x128xf32, #tpu.memory_space<vmem>>, %arg5: memref<128x128xbf16, #tpu.memory_space<vmem>>, %arg6: memref<1x128xf32, #tpu.memory_space<vmem>>, %arg7: memref<1x128xf32, #tpu.memory_space<vmem>>, %arg8: memref<8x128xf32, #tpu.memory_space<vmem>>, %arg9: memref<1x128xf32, #tpu.memory_space<vmem>>, %arg10: memref<8x128xf32, #tpu.memory_space<vmem>>) attributes {dimension_semantics = [], scalar_prefetch = 0 : i64, scratch_operands = 0 : i64, tpu.core_type = #tpu.core_type<tc>} {
    %c0 = arith.constant 0 : index
    %c0_0 = arith.constant 0 : index
    %0 = vector.load %arg0[%c0, %c0_0] : memref<8x16xf32, #tpu.memory_space<vmem>>, vector<8x16xf32>
    %1 = arith.truncf %0 : vector<8x16xf32> to vector<8x16xbf16>
    %c0_1 = arith.constant 0 : index
    %c0_2 = arith.constant 0 : index
    %2 = vector.load %arg1[%c0_1, %c0_2] : memref<16x256xbf16, #tpu.memory_space<vmem>>, vector<16x256xbf16>
    %cst = arith.constant dense<0.000000e+00> : vector<8x256xf32>
    %3 = tpu.matmul %1, %2, %cst {dimension_numbers = #tpu.dot_dimension_numbers<[1], [0], [0], [1], [0, 0, 1, 1], [], []>} : vector<8x16xbf16>, vector<16x256xbf16>, vector<8x256xf32> -> vector<8x256xf32>
    %4 = vector.extract_strided_slice %3 {offsets = [0, 0], sizes = [8, 128], strides = [1, 1]} : vector<8x256xf32> to vector<8x128xf32>
    %5 = vector.extract_strided_slice %3 {offsets = [0, 128], sizes = [8, 128], strides = [1, 1]} : vector<8x256xf32> to vector<8x128xf32>
    %c0_3 = arith.constant 0 : index
    %c0_4 = arith.constant 0 : index
    %6 = vector.load %arg9[%c0_3, %c0_4] : memref<1x128xf32, #tpu.memory_space<vmem>>, vector<1x128xf32>
    %7 = vector.broadcast %6 : vector<1x128xf32> to vector<8x128xf32>
    %8 = arith.addf %5, %7 : vector<8x128xf32>
    %c0_5 = arith.constant 0 : index
    %c0_6 = arith.constant 0 : index
    %9 = vector.load %arg2[%c0_5, %c0_6] : memref<1x128xf32, #tpu.memory_space<vmem>>, vector<1x128xf32>
    %c0_7 = arith.constant 0 : index
    %c0_8 = arith.constant 0 : index
    %10 = vector.load %arg3[%c0_7, %c0_8] : memref<1x128xf32, #tpu.memory_space<vmem>>, vector<1x128xf32>
    %c0_9 = arith.constant 0 : index
    %c0_10 = arith.constant 0 : index
    %11 = vector.load %arg4[%c0_9, %c0_10] : memref<8x128xf32, #tpu.memory_space<vmem>>, vector<8x128xf32>
    %cst_11 = arith.constant dense<0.000000e+00> : vector<128xf32>
    %12 = vector.multi_reduction <add>, %4, %cst_11 [0] : vector<8x128xf32> to vector<128xf32>
    %13 = vector.shape_cast %12 : vector<128xf32> to vector<1x128xf32>
    %cst_12 = arith.constant 8.000000e+00 : f32
    %14 = vector.broadcast %cst_12 : f32 to vector<1x128xf32>
    %15 = arith.divf %13, %14 : vector<1x128xf32>
    %16 = arith.mulf %4, %4 : vector<8x128xf32>
    %cst_13 = arith.constant dense<0.000000e+00> : vector<128xf32>
    %17 = vector.multi_reduction <add>, %16, %cst_13 [0] : vector<8x128xf32> to vector<128xf32>
    %18 = vector.shape_cast %17 : vector<128xf32> to vector<1x128xf32>
    %cst_14 = arith.constant 8.000000e+00 : f32
    %19 = vector.broadcast %cst_14 : f32 to vector<1x128xf32>
    %20 = arith.divf %18, %19 : vector<1x128xf32>
    %21 = arith.mulf %15, %15 : vector<1x128xf32>
    %22 = arith.subf %20, %21 : vector<1x128xf32>
    %cst_15 = arith.constant 0.000000e+00 : f32
    %23 = vector.broadcast %cst_15 : f32 to vector<1x128xf32>
    %24 = arith.maximumf %22, %23 : vector<1x128xf32>
    %cst_16 = arith.constant 9.99999974E-6 : f32
    %25 = vector.broadcast %cst_16 : f32 to vector<1x128xf32>
    %26 = arith.addf %24, %25 : vector<1x128xf32>
    %27 = math.rsqrt %26 : vector<1x128xf32>
    %28 = arith.mulf %9, %27 : vector<1x128xf32>
    %29 = arith.mulf %15, %28 : vector<1x128xf32>
    %30 = arith.subf %10, %29 : vector<1x128xf32>
    %31 = vector.broadcast %28 : vector<1x128xf32> to vector<8x128xf32>
    %32 = arith.mulf %4, %31 : vector<8x128xf32>
    %33 = vector.broadcast %30 : vector<1x128xf32> to vector<8x128xf32>
    %34 = arith.addf %32, %33 : vector<8x128xf32>
    %cst_17 = arith.constant 0.000000e+00 : f32
    %35 = vector.broadcast %cst_17 : f32 to vector<8x128xf32>
    %36 = arith.maximumf %34, %35 : vector<8x128xf32>
    %37 = arith.mulf %36, %11 : vector<8x128xf32>
    %38 = arith.truncf %37 : vector<8x128xf32> to vector<8x128xbf16>
    %c0_18 = arith.constant 0 : index
    %c0_19 = arith.constant 0 : index
    %39 = vector.load %arg5[%c0_18, %c0_19] : memref<128x128xbf16, #tpu.memory_space<vmem>>, vector<128x128xbf16>
    %cst_20 = arith.constant dense<0.000000e+00> : vector<8x128xf32>
    %40 = tpu.matmul %38, %39, %cst_20 {dimension_numbers = #tpu.dot_dimension_numbers<[1], [0], [0], [1], [0, 0, 1, 1], [], []>} : vector<8x128xbf16>, vector<128x128xbf16>, vector<8x128xf32> -> vector<8x128xf32>
    %c0_21 = arith.constant 0 : index
    %c0_22 = arith.constant 0 : index
    %41 = vector.load %arg6[%c0_21, %c0_22] : memref<1x128xf32, #tpu.memory_space<vmem>>, vector<1x128xf32>
    %c0_23 = arith.constant 0 : index
    %c0_24 = arith.constant 0 : index
    %42 = vector.load %arg7[%c0_23, %c0_24] : memref<1x128xf32, #tpu.memory_space<vmem>>, vector<1x128xf32>
    %c0_25 = arith.constant 0 : index
    %c0_26 = arith.constant 0 : index
    %43 = vector.load %arg8[%c0_25, %c0_26] : memref<8x128xf32, #tpu.memory_space<vmem>>, vector<8x128xf32>
    %cst_27 = arith.constant dense<0.000000e+00> : vector<128xf32>
    %44 = vector.multi_reduction <add>, %40, %cst_27 [0] : vector<8x128xf32> to vector<128xf32>
    %45 = vector.shape_cast %44 : vector<128xf32> to vector<1x128xf32>
    %cst_28 = arith.constant 8.000000e+00 : f32
    %46 = vector.broadcast %cst_28 : f32 to vector<1x128xf32>
    %47 = arith.divf %45, %46 : vector<1x128xf32>
    %48 = arith.mulf %40, %40 : vector<8x128xf32>
    %cst_29 = arith.constant dense<0.000000e+00> : vector<128xf32>
    %49 = vector.multi_reduction <add>, %48, %cst_29 [0] : vector<8x128xf32> to vector<128xf32>
    %50 = vector.shape_cast %49 : vector<128xf32> to vector<1x128xf32>
    %cst_30 = arith.constant 8.000000e+00 : f32
    %51 = vector.broadcast %cst_30 : f32 to vector<1x128xf32>
    %52 = arith.divf %50, %51 : vector<1x128xf32>
    %53 = arith.mulf %47, %47 : vector<1x128xf32>
    %54 = arith.subf %52, %53 : vector<1x128xf32>
    %cst_31 = arith.constant 0.000000e+00 : f32
    %55 = vector.broadcast %cst_31 : f32 to vector<1x128xf32>
    %56 = arith.maximumf %54, %55 : vector<1x128xf32>
    %cst_32 = arith.constant 9.99999974E-6 : f32
    %57 = vector.broadcast %cst_32 : f32 to vector<1x128xf32>
    %58 = arith.addf %56, %57 : vector<1x128xf32>
    %59 = math.rsqrt %58 : vector<1x128xf32>
    %60 = arith.mulf %41, %59 : vector<1x128xf32>
    %61 = arith.mulf %47, %60 : vector<1x128xf32>
    %62 = arith.subf %42, %61 : vector<1x128xf32>
    %63 = vector.broadcast %60 : vector<1x128xf32> to vector<8x128xf32>
    %64 = arith.mulf %40, %63 : vector<8x128xf32>
    %65 = vector.broadcast %62 : vector<1x128xf32> to vector<8x128xf32>
    %66 = arith.addf %64, %65 : vector<8x128xf32>
    %cst_33 = arith.constant 0.000000e+00 : f32
    %67 = vector.broadcast %cst_33 : f32 to vector<8x128xf32>
    %68 = arith.maximumf %66, %67 : vector<8x128xf32>
    %69 = arith.mulf %68, %43 : vector<8x128xf32>
    %70 = arith.addf %69, %8 : vector<8x128xf32>
    %c0_34 = arith.constant 0 : index
    %c0_35 = arith.constant 0 : index
    %71 = vector.load %arg10[%c0_34, %c0_35] : memref<8x128xf32, #tpu.memory_space<vmem>>, vector<8x128xf32>
    tpu.vector_store %arg10[%c0_34, %c0_35], %70 {strides = array<i32>} : memref<8x128xf32, #tpu.memory_space<vmem>>, vector<8x128xf32>,
    return
  }
}

</mosaic_0001>

<llo_original>
// kernel: tpu_custom_call.1
$region0: #{tpu_custom_call.1}
  #allocation0 [shape = 'u32[]', space=smem, size = 0x4, offset = 0x4, fixed_abs, tag = 'smem constant byte address 0x4 - core index']
  #allocation1 [shape = 'u32[144,128]{1,0:T(1,128)}', space=vmem, size = 0x12000, scoped, tag = 'internal scratch']
  %s0 = inlined_call_operand.hbm [shape: f32[8,16], index: 0, kind: input, shape index: {}]
  %s1 = inlined_call_operand.hbm [shape: bf16[16,256], index: 1, kind: input, shape index: {}]
  %s2 = inlined_call_operand.vmem [shape: f32[1,128], index: 2, kind: input, shape index: {}]
  %s3 = inlined_call_operand.vmem [shape: f32[1,128], index: 3, kind: input, shape index: {}]
  %s4 = inlined_call_operand.hbm [shape: f32[8,128], index: 4, kind: input, shape index: {}]
  %s5 = inlined_call_operand.hbm [shape: bf16[128,128], index: 5, kind: input, shape index: {}]
  %s6 = inlined_call_operand.vmem [shape: f32[1,128], index: 6, kind: input, shape index: {}]
  %s7 = inlined_call_operand.vmem [shape: f32[1,128], index: 7, kind: input, shape index: {}]
  %s8 = inlined_call_operand.vmem [shape: f32[8,128], index: 8, kind: input, shape index: {}]
  %s9 = inlined_call_operand.vmem [shape: f32[1,128], index: 9, kind: input, shape index: {}]
  %s10 = inlined_call_operand.hbm [shape: f32[8,128], index: 10, kind: output, shape index: {}]
  %s11 = sld [smem:[#allocation0]]
  $region66: #{tpu_custom_call.1} parent=0
    _
  %s13 = ssub.s32 1, %s11
  %s14 = scalar_select 0, %s13, %s11
  $region1: #{tpu_custom_call.1} parent=0
    #allocation2 [shape = 'u8[4096]{0}', space=vmem, size = 0x1000, scoped, tag = 'input window, operand 0, single buffered']
    #allocation3 [shape = 's32[1]{0}', space=sflag, size = 0x4, scoped, tag = 'scoped memory for tpu_custom_call.1']
    #allocation4 [shape = 's32[1]{0}', space=sflag, size = 0x4, scoped, tag = 'scoped memory for tpu_custom_call.1']
    #allocation5 [shape = 'u8[8192]{0}', space=vmem, size = 0x2000, scoped, tag = 'input window, operand 1, single buffered']
    #allocation6 [shape = 's32[1]{0}', space=sflag, size = 0x4, scoped, tag = 'scoped memory for tpu_custom_call.1']
    #allocation7 [shape = 'u8[4096]{0}', space=vmem, size = 0x1000, scoped, tag = 'input window, operand 4, single buffered']
    #allocation8 [shape = 'u8[32768]{0}', space=vmem, size = 0x8000, scoped, tag = 'input window, operand 5, single buffered']
    #allocation9 [shape = 's32[1]{0}', space=sflag, size = 0x4, scoped, tag = 'scoped memory for tpu_custom_call.1']
    #allocation10 [shape = 'u8[4096]{0}', space=vmem, size = 0x1000, scoped, tag = 'output window, operand 0, single buffered']
    %15 = vsyncpa [#allocation3], 0
    %16 = vsyncpa [#allocation6], 0
    %17 = vsyncpa [#allocation9], 0
    %18 = vsyncpa [#allocation4], 0
    // Predicated region
    $region2: #{tpu_custom_call.1} parent=1 // pred_check
      _
    $region3: #{tpu_custom_call.1} parent=1 // pred_check_branch
      %20 = sbr.rel (0) target = $region5
    $region4: #{tpu_custom_call.1} parent=1 // pred_region
      %s22 = ssub.s32 128, 128
      %23 = vsyncadd [#allocation3], %s22
      %s25 = sshll.u32 [#allocation2], 4
      %s26 = int_to_ptr.vmem [resolvable:$true] %s25
      %28 = dma.hbm_to_vmem [thread:$0]  %s0, 128, %s26, [#allocation3]
    $region5: #{tpu_custom_call.1} parent=1 // pred_fallthru
      _
    // Predicated region
    $region6: #{tpu_custom_call.1} parent=1 // pred_check
      _
    $region7: #{tpu_custom_call.1} parent=1 // pred_check_branch
      %30 = sbr.rel (0) target = $region9
    $region8: #{tpu_custom_call.1} parent=1 // pred_region
      %s32 = ssub.s32 256, 256
      %33 = vsyncadd [#allocation6], %s32
      %s34 = sshll.u32 [#allocation5], 4
      %s35 = int_to_ptr.vmem [resolvable:$true] %s34
      %40 = dma.hbm_to_vmem [thread:$0]  %s1, 256, %s35, [#allocation6], 128, 128, 8
    $region9: #{tpu_custom_call.1} parent=1 // pred_fallthru
      _
    // Predicated region
    $region10: #{tpu_custom_call.1} parent=1 // pred_check
      _
    $region11: #{tpu_custom_call.1} parent=1 // pred_check_branch
      %42 = sbr.rel (0) target = $region13
    $region12: #{tpu_custom_call.1} parent=1 // pred_region
      _
    $region13: #{tpu_custom_call.1} parent=1 // pred_fallthru
      _
    // Predicated region
    $region14: #{tpu_custom_call.1} parent=1 // pred_check
      _
    $region15: #{tpu_custom_call.1} parent=1 // pred_check_branch
      %44 = sbr.rel (0) target = $region17
    $region16: #{tpu_custom_call.1} parent=1 // pred_region
      _
    $region17: #{tpu_custom_call.1} parent=1 // pred_fallthru
      _
    // Predicated region
    $region18: #{tpu_custom_call.1} parent=1 // pred_check
      _
    $region19: #{tpu_custom_call.1} parent=1 // pred_check_branch
      %46 = sbr.rel (0) target = $region21
    $region20: #{tpu_custom_call.1} parent=1 // pred_region
      %s48 = ssub.s32 128, 128
      %49 = vsyncadd [#allocation6], %s48
      %s51 = sshll.u32 [#allocation7], 4
      %s52 = int_to_ptr.vmem [resolvable:$true] %s51
      %54 = dma.hbm_to_vmem [thread:$0]  %s4, 128, %s52, [#allocation6]
    $region21: #{tpu_custom_call.1} parent=1 // pred_fallthru
      _
    // Predicated region
    $region22: #{tpu_custom_call.1} parent=1 // pred_check
      _
    $region23: #{tpu_custom_call.1} parent=1 // pred_check_branch
      %56 = sbr.rel (0) target = $region25
    $region24: #{tpu_custom_call.1} parent=1 // pred_region
      %s58 = ssub.s32 1024, 1024
      %59 = vsyncadd [#allocation9], %s58
      %s60 = sshll.u32 [#allocation8], 4
      %s61 = int_to_ptr.vmem [resolvable:$true] %s60
      %66 = dma.hbm_to_vmem [thread:$0]  %s5, 1024, %s61, [#allocation9], 64, 64, 4
    $region25: #{tpu_custom_call.1} parent=1 // pred_fallthru
      _
    // Predicated region
    $region26: #{tpu_custom_call.1} parent=1 // pred_check
      _
    $region27: #{tpu_custom_call.1} parent=1 // pred_check_branch
      %68 = sbr.rel (0) target = $region29
    $region28: #{tpu_custom_call.1} parent=1 // pred_region
      _
    $region29: #{tpu_custom_call.1} parent=1 // pred_fallthru
      _
    // Predicated region
    $region30: #{tpu_custom_call.1} parent=1 // pred_check
      _
    $region31: #{tpu_custom_call.1} parent=1 // pred_check_branch
      %70 = sbr.rel (0) target = $region33
    $region32: #{tpu_custom_call.1} parent=1 // pred_region
      _
    $region33: #{tpu_custom_call.1} parent=1 // pred_fallthru
      _
    // Predicated region
    $region34: #{tpu_custom_call.1} parent=1 // pred_check
      _
    $region35: #{tpu_custom_call.1} parent=1 // pred_check_branch
      %72 = sbr.rel (0) target = $region37
    $region36: #{tpu_custom_call.1} parent=1 // pred_region
      _
    $region37: #{tpu_custom_call.1} parent=1 // pred_fallthru
      _
    // Predicated region
    $region38: #{tpu_custom_call.1} parent=1 // pred_check
      _
    $region39: #{tpu_custom_call.1} parent=1 // pred_check_branch
      %74 = sbr.rel (0) target = $region41
    $region40: #{tpu_custom_call.1} parent=1 // pred_region
      _
    $region41: #{tpu_custom_call.1} parent=1 // pred_fallthru
      _
    // Predicated region
    $region42: #{tpu_custom_call.1} parent=1 // pred_check
      _
    $region43: #{tpu_custom_call.1} parent=1 // pred_check_branch
      %76 = sbr.rel (0) target = $region45
    $region44: #{tpu_custom_call.1} parent=1 // pred_region
      %77 = dma.done [#allocation3], 128
    $region45: #{tpu_custom_call.1} parent=1 // pred_fallthru
      _
    // Predicated region
    $region46: #{tpu_custom_call.1} parent=1 // pred_check
      _
    $region47: #{tpu_custom_call.1} parent=1 // pred_check_branch
      %79 = sbr.rel (0) target = $region49
    $region48: #{tpu_custom_call.1} parent=1 // pred_region
      %80 = dma.done [#allocation6], 256
    $region49: #{tpu_custom_call.1} parent=1 // pred_fallthru
      _
    // Predicated region
    $region50: #{tpu_custom_call.1} parent=1 // pred_check
      _
    $region51: #{tpu_custom_call.1} parent=1 // pred_check_branch
      %82 = sbr.rel (0) target = $region53
    $region52: #{tpu_custom_call.1} parent=1 // pred_region
      %83 = dma.done [#allocation6], 128
    $region53: #{tpu_custom_call.1} parent=1 // pred_fallthru
      _
    // Predicated region
    $region54: #{tpu_custom_call.1} parent=1 // pred_check
      _
    $region55: #{tpu_custom_call.1} parent=1 // pred_check_branch
      %85 = sbr.rel (0) target = $region57
    $region56: #{tpu_custom_call.1} parent=1 // pred_region
      %86 = dma.done [#allocation9], 1024
    $region57: #{tpu_custom_call.1} parent=1 // pred_fallthru
      _
    %v88 = vld [vmem:[#allocation2] sm:$0xff]
    %v89 = vpack.c.bf16 %v88, %v88
    %v90 = vld [vmem:[#allocation5] sm:$0xff]
    %v91 = vld [vmem:[#allocation5 + $0x8] sm:$0xff]
    %v94 = vunpack.c.l.b16 %v90
    %v95 = vunpack.c.h.b16 %v90
    %v96 = vunpack.c.l.b16 %v91
    %v97 = vunpack.c.h.b16 %v91
    %v98 = vpack.c.b16 %v96, %v94
    %v99 = vpack.c.b16 %v97, %v95
    %vm102 = vcmask 130048
    %v104 = vsel %vm102, %v89, 0
    %106 = vmatprep.subr.bf16.mxu0 0
    %107 = vmatpush1.bf16.msra.mxu0 0
    %108 = vmatprep.subr.bf16.mxu0 0
    %109 = vmatpush1.bf16.msra.mxu0 0
    %110 = vmatprep.subr.bf16.mxu0 0
    %111 = vmatpush1.bf16.msra.mxu0 0
    %112 = vmatprep.subr.bf16.mxu0 0
    %113 = vmatpush1.bf16.msra.mxu0 0
    %114 = vmatprep.subr.bf16.mxu0 0
    %115 = vmatpush1.bf16.msra.mxu0 0
    %116 = vmatprep.subr.bf16.mxu0 0
    %117 = vmatpush1.bf16.msra.mxu0 0
    %118 = vmatprep.subr.bf16.mxu0 0
    %119 = vmatpush1.bf16.msra.mxu0 0
    %120 = vmatprep.subr.bf16.mxu0 %v99
    %121 = vmatpush1.bf16.msra.mxu0 %v98
    %122 = vmatprep.subr.bf16.mxu0 0
    %123 = vmatpush2.bf16.msra.mxu0 0
    %124 = vmatprep.subr.bf16.mxu0 0
    %125 = vmatpush2.bf16.msra.mxu0 0
    %126 = vmatprep.subr.bf16.mxu0 0
    %127 = vmatpush2.bf16.msra.mxu0 0
    %128 = vmatprep.subr.bf16.mxu0 0
    %129 = vmatpush2.bf16.msra.mxu0 0
    %130 = vmatprep.subr.bf16.mxu0 0
    %131 = vmatpush2.bf16.msra.mxu0 0
    %132 = vmatprep.subr.bf16.mxu0 0
    %133 = vmatpush2.bf16.msra.mxu0 0
    %134 = vmatprep.subr.bf16.mxu0 0
    %135 = vmatpush2.bf16.msra.mxu0 0
    %136 = vmatprep.subr.bf16.mxu0 0
    %137 = vmatpush2.bf16.msra.mxu0 0
    %138 = vmatprep.mubr.bf16.mxu0 0
    %139 = vmatmul.mubr.bf16.gmra.mxu0 %v104
    %v140 = vpop.f32.mrf.mxu0
    %v141 = vadd.f32 0.0, %v140
    %v142 = vpop.f32.mrf.mxu0
    %v143 = vadd.f32 0.0, %v142
    %v144 = vpop.f32.mrf.mxu0
    %v145 = vpop.f32.mrf.mxu0
    %146 = vdwg.mxu0
    %v147 = vld [vmem:[%s9] sm:$0x1]
    %v149 = vlaneseq
    %v150 = vshrl.u32 %v149, 7
    %v151 = vsub.s32 0, %v150
    %v152 = vrot.slane %v147, %v151
    %v154 = vadd.f32 %v143, %v152
    %v155 = vld [vmem:[%s2] sm:$0x1]
    %v156 = vld [vmem:[%s3] sm:$0x1]
    %v157 = vld [vmem:[#allocation7] sm:$0xff]
    %v158 = vrot.slane %v141, 4
    %v159 = vadd.f32 %v141, %v158
    %v160 = vrot.slane %v159, 2
    %v161 = vadd.f32 %v159, %v160
    %v162 = vrot.slane %v161, 1
    %v163 = vadd.f32 %v161, %v162
    %v164 = vrcp.pop 8.0
    %v165 = vmul.f32 %v163, %v164
    %v166 = vmul.f32 %v141, %v141
    %v167 = vrot.slane %v166, 4
    %v168 = vadd.f32 %v166, %v167
    %v169 = vrot.slane %v168, 2
    %v170 = vadd.f32 %v168, %v169
    %v171 = vrot.slane %v170, 1
    %v172 = vadd.f32 %v170, %v171
    %v173 = vmul.f32 %v172, %v164
    %v174 = vmul.f32 %v165, %v165
    %v175 = vsub.f32 %v173, %v174
    %v176 = vmax.f32 %v175, 0.0
    %v177 = vadd.f32 %v176, 1e-05
    %v178 = vrsqrt.pop %v177
    %v179 = vmul.f32 %v155, %v178
    %v180 = vmul.f32 %v165, %v179
    %v181 = vsub.f32 %v156, %v180
    %v183 = vlaneseq
    %v184 = vshrl.u32 %v183, 7
    %v185 = vsub.s32 0, %v184
    %v186 = vrot.slane %v179, %v185
    %v188 = vmul.f32 %v141, %v186
    %v190 = vlaneseq
    %v191 = vshrl.u32 %v190, 7
    %v192 = vsub.s32 0, %v191
    %v193 = vrot.slane %v181, %v192
    %v195 = vadd.f32 %v188, %v193
    %v196 = vmax.f32 %v195, 0.0
    %v197 = vmul.f32 %v196, %v157
    %v198 = vpack.c.bf16 %v197, %v197
    %v199 = vld [vmem:[#allocation8] sm:$0xf]
    %v200 = vld [vmem:[#allocation8 + $0x4] sm:$0xf]
    %v201 = vld [vmem:[#allocation8 + $0x8] sm:$0xf]
    %v202 = vld [vmem:[#allocation8 + $0xc] sm:$0xf]
    %v203 = vld [vmem:[#allocation8 + $0x10] sm:$0xf]
    %v204 = vld [vmem:[#allocation8 + $0x14] sm:$0xf]
    %v205 = vld [vmem:[#allocation8 + $0x18] sm:$0xf]
    %v206 = vld [vmem:[#allocation8 + $0x1c] sm:$0xf]
    %v207 = vld [vmem:[#allocation8 + $0x20] sm:$0xf]
    %v208 = vld [vmem:[#allocation8 + $0x24] sm:$0xf]
    %v209 = vld [vmem:[#allocation8 + $0x28] sm:$0xf]
    %v210 = vld [vmem:[#allocation8 + $0x2c] sm:$0xf]
    %v211 = vld [vmem:[#allocation8 + $0x30] sm:$0xf]
    %v212 = vld [vmem:[#allocation8 + $0x34] sm:$0xf]
    %v213 = vld [vmem:[#allocation8 + $0x38] sm:$0xf]
    %v214 = vld [vmem:[#allocation8 + $0x3c] sm:$0xf]
    %v231 = vunpack.c.l.b16 %v199
    %v232 = vunpack.c.l.b16 %v200
    %v233 = vunpack.c.l.b16 %v201
    %v234 = vunpack.c.l.b16 %v202
    %v235 = vunpack.c.l.b16 %v203
    %v236 = vunpack.c.l.b16 %v204
    %v237 = vunpack.c.l.b16 %v205
    %v238 = vunpack.c.l.b16 %v206
    %v239 = vunpack.c.l.b16 %v207
    %v240 = vunpack.c.l.b16 %v208
    %v241 = vunpack.c.l.b16 %v209
    %v242 = vunpack.c.l.b16 %v210
    %v243 = vunpack.c.l.b16 %v211
    %v244 = vunpack.c.l.b16 %v212
    %v245 = vunpack.c.l.b16 %v213
    %v246 = vunpack.c.l.b16 %v214
    %v247 = vpack.c.b16 %v232, %v231
    %v248 = vpack.c.b16 %v234, %v233
    %v249 = vpack.c.b16 %v236, %v235
    %v250 = vpack.c.b16 %v238, %v237
    %v251 = vpack.c.b16 %v240, %v239
    %v252 = vpack.c.b16 %v242, %v241
    %v253 = vpack.c.b16 %v244, %v243
    %v254 = vpack.c.b16 %v246, %v245
    %263 = vmatprep.subr.bf16.mxu0 0
    %264 = vmatpush1.bf16.msra.mxu0 %v254
    %265 = vmatprep.subr.bf16.mxu0 0
    %266 = vmatpush1.bf16.msra.mxu0 %v253
    %267 = vmatprep.subr.bf16.mxu0 0
    %268 = vmatpush1.bf16.msra.mxu0 %v252
    %269 = vmatprep.subr.bf16.mxu0 0
    %270 = vmatpush1.bf16.msra.mxu0 %v251
    %271 = vmatprep.subr.bf16.mxu0 0
    %272 = vmatpush1.bf16.msra.mxu0 %v250
    %273 = vmatprep.subr.bf16.mxu0 0
    %274 = vmatpush1.bf16.msra.mxu0 %v249
    %275 = vmatprep.subr.bf16.mxu0 0
    %276 = vmatpush1.bf16.msra.mxu0 %v248
    %277 = vmatprep.subr.bf16.mxu0 0
    %278 = vmatpush1.bf16.msra.mxu0 %v247
    %279 = vmatprep.subr.bf16.mxu0 0
    %280 = vmatpush2.bf16.msra.mxu0 0
    %281 = vmatprep.subr.bf16.mxu0 0
    %282 = vmatpush2.bf16.msra.mxu0 0
    %283 = vmatprep.subr.bf16.mxu0 0
    %284 = vmatpush2.bf16.msra.mxu0 0
    %285 = vmatprep.subr.bf16.mxu0 0
    %286 = vmatpush2.bf16.msra.mxu0 0
    %287 = vmatprep.subr.bf16.mxu0 0
    %288 = vmatpush2.bf16.msra.mxu0 0
    %289 = vmatprep.subr.bf16.mxu0 0
    %290 = vmatpush2.bf16.msra.mxu0 0
    %291 = vmatprep.subr.bf16.mxu0 0
    %292 = vmatpush2.bf16.msra.mxu0 0
    %293 = vmatprep.subr.bf16.mxu0 0
    %294 = vmatpush2.bf16.msra.mxu0 0
    %295 = vmatprep.mubr.bf16.mxu0 0
    %296 = vmatmul.mubr.bf16.gmra.mxu0 %v198
    %v297 = vpop.f32.mrf.mxu0
    %v298 = vadd.f32 0.0, %v297
    %v299 = vpop.f32.mrf.mxu0
    %v300 = vpop.f32.mrf.mxu0
    %v301 = vpop.f32.mrf.mxu0
    %302 = vdwg.mxu0
    %v303 = vld [vmem:[%s6] sm:$0x1]
    %v304 = vld [vmem:[%s7] sm:$0x1]
    %v305 = vld [vmem:[%s8] sm:$0xff]
    %v306 = vrot.slane %v298, 4
    %v307 = vadd.f32 %v298, %v306
    %v308 = vrot.slane %v307, 2
    %v309 = vadd.f32 %v307, %v308
    %v310 = vrot.slane %v309, 1
    %v311 = vadd.f32 %v309, %v310
    %v312 = vmul.f32 %v311, %v164
    %v313 = vmul.f32 %v298, %v298
    %v314 = vrot.slane %v313, 4
    %v315 = vadd.f32 %v313, %v314
    %v316 = vrot.slane %v315, 2
    %v317 = vadd.f32 %v315, %v316
    %v318 = vrot.slane %v317, 1
    %v319 = vadd.f32 %v317, %v318
    %v320 = vmul.f32 %v319, %v164
    %v321 = vmul.f32 %v312, %v312
    %v322 = vsub.f32 %v320, %v321
    %v323 = vmax.f32 %v322, 0.0
    %v324 = vadd.f32 %v323, 1e-05
    %v325 = vrsqrt.pop %v324
    %v326 = vmul.f32 %v303, %v325
    %v327 = vmul.f32 %v312, %v326
    %v328 = vsub.f32 %v304, %v327
    %v330 = vlaneseq
    %v331 = vshrl.u32 %v330, 7
    %v332 = vsub.s32 0, %v331
    %v333 = vrot.slane %v326, %v332
    %v335 = vmul.f32 %v298, %v333
    %v337 = vlaneseq
    %v338 = vshrl.u32 %v337, 7
    %v339 = vsub.s32 0, %v338
    %v340 = vrot.slane %v328, %v339
    %v342 = vadd.f32 %v335, %v340
    %v343 = vmax.f32 %v342, 0.0
    %v344 = vmul.f32 %v343, %v305
    %v345 = vadd.f32 %v344, %v154
    %346 = vst [vmem:[#allocation10] sm:$0xff] %v345
    // Predicated region
    $region58: #{tpu_custom_call.1} parent=1 // pred_check
      _
    $region59: #{tpu_custom_call.1} parent=1 // pred_check_branch
      %348 = sbr.rel (0) target = $region61
    $region60: #{tpu_custom_call.1} parent=1 // pred_region
      %s350 = ssub.s32 128, 128
      %351 = vsyncadd [#allocation4], %s350
      %s353 = sshll.u32 [#allocation10], 4
      %s354 = int_to_ptr.vmem [resolvable:$true] %s353
      %356 = dma.vmem_to_hbm [thread:$0]  %s354, 128, %s10, [#allocation4]
    $region61: #{tpu_custom_call.1} parent=1 // pred_fallthru
      _
    // Predicated region
    $region62: #{tpu_custom_call.1} parent=1 // pred_check
      _
    $region63: #{tpu_custom_call.1} parent=1 // pred_check_branch
      %358 = sbr.rel (0) target = $region65
    $region64: #{tpu_custom_call.1} parent=1 // pred_region
      %359 = dma.done [#allocation4], 128
    $region65: #{tpu_custom_call.1} parent=1 // pred_fallthru
      _
    %360 = vsyncpa [#allocation3], 1
    %361 = vsyncpa [#allocation6], 1
    %362 = vsyncpa [#allocation9], 1
    %363 = vsyncpa [#allocation4], 1

</llo_original>
